<compile_context>
chip_gen: v5e
topology: v5e:2x2
jax: 0.10.0
libtpu: 0.0.40
codegen_flags: <defaults>
</compile_context>

<pallas_src>
import functools
import math

import jax
import jax.numpy as jnp
from jax import lax
from jax.experimental import pallas as pl
from jax.experimental.pallas import tpu as pltpu


# ---------------------------------------------------------------------------
# Kernel A: sigma = sqrt(mean(x[0]**2)) * 10**(-snr0/20), epilogue fused.
# ---------------------------------------------------------------------------
def _rms_sigma_kernel(scale_ref, x_ref, sigma_ref, *, inv_n, n_valid_cols):
    j = pl.program_id(0)

    @pl.when(j == 0)
    def _init():
        sigma_ref[...] = jnp.zeros_like(sigma_ref)

    xv = x_ref[...].astype(jnp.float32)
    if n_valid_cols is not None:  # static: only emitted when the tail chunk is ragged
        chunk = x_ref.shape[1]
        col = lax.broadcasted_iota(jnp.int32, x_ref.shape, 1) + j * chunk
        xv = jnp.where(col < n_valid_cols, xv, 0.0)
    # Running sum of squares accumulated in the (1,1) output block (resident
    # across the "arbitrary" reduction axis).
    sigma_ref[...] += jnp.sum(xv * xv, keepdims=True)

    @pl.when(j == pl.num_programs(0) - 1)
    def _finalize():
        sigma_ref[...] = jnp.sqrt(sigma_ref[...] * inv_n) * scale_ref[0]


# ---------------------------------------------------------------------------
# Standard normal from 32 hashed bits per element (inverse CDF).
# ---------------------------------------------------------------------------
_SQRT2 = math.sqrt(2.0)
# Giles' erfinvf central branch (w < 5 i.e. |t| <= 0.9966), pre-scaled by
# sqrt(2) so the polynomial directly yields the normal quantile z = p(w-2.5)*t.
_C_CENTRAL = tuple(c * _SQRT2 for c in (
    2.81022636e-08, 3.43273939e-07, -3.5233877e-06, -4.39150654e-06,
    2.1858087e-04, -1.25372503e-03, -4.17768164e-03, 2.46640727e-01,
    1.50140941e+00))
# Cheap 2-term tail fit  p ~= a*sqrt(w) + b  for w in [5, 16) (<0.4% of samples,
# <0.4% relative error) replacing Giles' 9-term tail polynomial.
_C_TAIL_A = 0.9994 * _SQRT2
_C_TAIL_B = -0.160 * _SQRT2


def _srl(x, n):
    # Logical right shift on int32 (jnp.right_shift on signed ints is arithmetic).
    return lax.shift_right_logical(x, jnp.full(x.shape, n, x.dtype))


def _hash32(x):
    """lowbias32 integer mixer (bijective on 32 bits) -> well mixed bits."""
    x = x ^ _srl(x, 16)
    x = x * jnp.int32(0x21F0AAAD)
    x = x ^ _srl(x, 15)
    x = x * jnp.int32(0x735A2D97)
    x = x ^ _srl(x, 15)
    return x


# ---------------------------------------------------------------------------
# Kernel B: out = x + sigma * N(0, 1)
# ---------------------------------------------------------------------------
def _noise_add_kernel(sigma_ref, seed_ref, x_ref, o_ref):
    i = pl.program_id(0)
    j = pl.program_id(1)
    nj = pl.num_programs(1)
    tb, tl = x_ref.shape

    # Unique 32-bit counter per element (mod 2**32), per-block offset done on
    # the scalar path; the local index is a compile-time constant pattern.
    block_seed = seed_ref[0] + (i * nj + j) * (tb * tl)
    local = (lax.broadcasted_iota(jnp.int32, (tb, tl), 0) * tl
             + lax.broadcasted_iota(jnp.int32, (tb, tl), 1))
    bits = _hash32(local + block_seed)

    # 24 random bits -> t uniform in (-1, 1), exactly zero mean, |t| <= 1 - 2^-24.
    m24 = _srl(bits, 8).astype(jnp.float32)
    t = m24 * jnp.float32(2.0 ** -23) - jnp.float32(1.0 - 2.0 ** -24)

    # z = sqrt(2) * erfinv(t): one log (EUP), 8-FMA central poly, tiny sqrt tail.
    w = -jnp.log(1.0 - t * t)            # w in [0, ~16): always finite
    dw = w - 2.5
    p_c = jnp.float32(_C_CENTRAL[0])
    for c in _C_CENTRAL[1:]:
        p_c = p_c * dw + jnp.float32(c)
    p_t = jnp.float32(_C_TAIL_A) * jnp.sqrt(w) + jnp.float32(_C_TAIL_B)
    z = jnp.where(w < 5.0, p_c, p_t) * t

    sigma = sigma_ref[0, 0]
    o_ref[...] = (x_ref[...].astype(jnp.float32) + sigma * z).astype(o_ref.dtype)


# ---------------------------------------------------------------------------
# Wrapper
# ---------------------------------------------------------------------------
def _fold_shape(batch, length):
    """Row-major-preserving fold of the flat [batch*length] buffer into a
    sublane/lane-dense 2-D slab (8 rows -> full vreg sublane occupancy)."""
    n = batch * length
    for r in (8, 4, 2):
        if n % r == 0 and n // r >= 128:
            return r, n // r
    # TODO(synk): odd batch*length -> <8 sublanes per vreg (rare for audio).
    return batch, length


def gaussian_noise(x, key, *, snr_min=80.0, snr_max=80.0,
                   block_bytes=1024 * 1024, donate_x=False):
    assert x.ndim == 2, "expected an audio batch of shape [batch, length]"
    batch, length = x.shape
    key_snr, key_seed = jax.random.split(key)

    # --- 10**(-snr0/20): only batch element 0's draw matters (reference `[0][0]`) ---
    if snr_min == snr_max:
        scale = jnp.full((1,), 10.0 ** (-float(snr_min) / 20.0), jnp.float32)
    else:
        snr0 = jax.random.uniform(key_snr, (), jnp.float32, snr_min, snr_max)
        scale = (10.0 ** (-snr0 / 20.0)).astype(jnp.float32).reshape(1)

    # --- Kernel A: sigma = rms(x[0]) * scale, sublane-dense, fused epilogue --------
    ra = next((f for f in (8, 4, 2) if length % f == 0), 1)
    ca = length // ra
    chunk = ca if ca <= 32768 else 32768              # multiple of 128 when chunked
    n_valid_cols = None if ca % chunk == 0 else ca
    row0 = x[0].reshape(ra, ca)                       # contiguous -> free reshape
    sigma = pl.pallas_call(
        functools.partial(_rms_sigma_kernel, inv_n=1.0 / length,
                          n_valid_cols=n_valid_cols),
        out_shape=jax.ShapeDtypeStruct((1, 1), jnp.float32),
        grid_spec=pltpu.PrefetchScalarGridSpec(
            num_scalar_prefetch=0,
            grid=(pl.cdiv(ca, chunk),),
            in_specs=[
                pl.BlockSpec(memory_space=pltpu.MemorySpace.SMEM),  # scale (1,) f32
                pl.BlockSpec((ra, chunk), lambda j: (0, j)),
            ],
            out_specs=pl.BlockSpec((1, 1), lambda j: (0, 0)),
        ),
        compiler_params=pltpu.CompilerParams(dimension_semantics=("arbitrary",)),
    )(scale, row0)

    seed = jax.random.randint(key_seed, (1,), 0, jnp.iinfo(jnp.int32).max,
                              dtype=jnp.int32)

    # --- Kernel B: out = x + sigma * N(0,1), lane/sublane-dense tiling -------------
    R, C = _fold_shape(batch, length)
    xr = x.reshape(R, C)                              # contiguous -> free reshape
    tb = R if R < 8 else 8
    elems = max(tb * 128, block_bytes // 4)
    lane_budget = max(128, (elems // tb) // 128 * 128)
    tl = C if C <= lane_budget else lane_budget
    if pl.cdiv(R, tb) * pl.cdiv(C, tl) < 2 and C >= 256:
        # Keep >=2 "parallel" blocks so both v7x TensorCores get work.
        tl = ((pl.cdiv(C, 2) + 127) // 128) * 128
    grid = (pl.cdiv(R, tb), pl.cdiv(C, tl))

    out = pl.pallas_call(
        _noise_add_kernel,
        out_shape=jax.ShapeDtypeStruct((R, C), x.dtype),
        grid_spec=pltpu.PrefetchScalarGridSpec(
            num_scalar_prefetch=0,
            grid=grid,
            in_specs=[
                pl.BlockSpec(memory_space=pltpu.MemorySpace.SMEM),  # sigma (1,1) f32
                pl.BlockSpec(memory_space=pltpu.MemorySpace.SMEM),  # seed  (1,)  i32
                pl.BlockSpec((tb, tl), lambda i, j: (i, j)),        # x tiles
            ],
            out_specs=pl.BlockSpec((tb, tl), lambda i, j: (i, j)),
        ),
        compiler_params=pltpu.CompilerParams(
            dimension_semantics=("parallel", "parallel"),
            vmem_limit_bytes=32 * 1024 * 1024),
        # Optional: let callers donate x (same shape/dtype) to avoid a second
        # HBM allocation.  Off by default so x stays valid for the caller.
        input_output_aliases=({2: 0} if donate_x else {}),
    )(sigma, seed, xr)
    return out.reshape(batch, length)


if __name__ == "__main__":
    key = jax.random.PRNGKey(0)
    k_x, k_noise = jax.random.split(key)

    # Small audio batch [batch, length] (~1 s of 48 kHz audio per example).
    batch, length = 4, 48000
    x = jax.random.normal(k_x, (batch, length), dtype=jnp.float32)

    snr = 80.0
    # Small block_bytes so this tiny demo still exercises a multi-block,
    # ragged-edge, parallel grid (production default is 1 MiB blocks).
    run = functools.partial(gaussian_noise, snr_min=snr, snr_max=snr,
                            block_bytes=256 * 1024)
    out = jax.block_until_ready(run(x, k_noise))

    # Reference scalar pipeline (same math as the torch module).
    rms0 = jnp.sqrt(jnp.mean(x[0].astype(jnp.float32) ** 2))
    sigma_ref = float(rms0 * 10.0 ** (-snr / 20.0))

    assert out.shape == x.shape and out.dtype == x.dtype
    assert bool(jnp.all(jnp.isfinite(out)))

    # TODO(synk): torch's host RNG cannot be bit-matched; validate the noise
    # statistically (std == rms_noise, ~zero mean) instead of elementwise.
    noise = (out - x).astype(jnp.float32)
    std = float(jnp.std(noise))
    mean = float(jnp.mean(noise))
    assert abs(std / sigma_ref - 1.0) < 0.05, (std, sigma_ref)
    assert abs(mean) < 0.05 * sigma_ref, (mean, sigma_ref)

    # Deterministic for a fixed key.
    out2 = jax.block_until_ready(run(x, k_noise))
    assert bool(jnp.array_equal(out, out2))

    print("KERNEL_OK")
</pallas_src>

<mosaic_0001>
module attributes {stable_mosaic.version = 11 : i64} {
  func.func @_rms_sigma_kernel(%arg0: i32, %arg1: memref<1xf32, #tpu.memory_space<smem>>, %arg2: memref<8x6000xf32, #tpu.memory_space<vmem>>, %arg3: memref<1x1xf32, #tpu.memory_space<vmem>>) attributes {dimension_semantics = [#tpu.dimension_semantics<arbitrary>], iteration_bounds = array<i64: 1>, scalar_prefetch = 0 : i64, scratch_operands = 0 : i64, tpu.core_type = #tpu.core_type<tc>, window_params = [{transform_indices = @transform_0, window_bounds = array<i64: 1>}, {transform_indices = @transform_1, window_bounds = array<i64: 8, 6000>}, {pipeline_mode = #tpu.pipeline_mode<synchronous>, transform_indices = @transform_2, window_bounds = array<i64: 1, 1>}]} {
    %c0_i32 = arith.constant 0 : i32
    %0 = arith.cmpi eq, %arg0, %c0_i32 : i32
    %1 = arith.extui %0 : i1 to i32
    %c0_i32_0 = arith.constant 0 : i32
    %2 = arith.cmpi ne, %1, %c0_i32_0 : i32
    scf.if %2 {
      %cst_8 = arith.constant 0.000000e+00 : f32
      %16 = vector.broadcast %cst_8 : f32 to vector<1x1xf32>
      %c0_9 = arith.constant 0 : index
      %c0_10 = arith.constant 0 : index
      %17 = vector.load %arg3[%c0_9, %c0_10] : memref<1x1xf32, #tpu.memory_space<vmem>>, vector<1x1xf32>
      tpu.vector_store %arg3[%c0_9, %c0_10], %16 {strides = array<i32>} : memref<1x1xf32, #tpu.memory_space<vmem>>, vector<1x1xf32>,
    } else {
    }
    %c0 = arith.constant 0 : index
    %c0_1 = arith.constant 0 : index
    %3 = vector.load %arg2[%c0, %c0_1] : memref<8x6000xf32, #tpu.memory_space<vmem>>, vector<8x6000xf32>
    %c0_2 = arith.constant 0 : index
    %c0_3 = arith.constant 0 : index
    %4 = vector.load %arg3[%c0_2, %c0_3] : memref<1x1xf32, #tpu.memory_space<vmem>>, vector<1x1xf32>
    %5 = arith.mulf %3, %3 : vector<8x6000xf32>
    %6 = vector.shape_cast %5 : vector<8x6000xf32> to vector<1x8x6000xf32>
    %cst = arith.constant dense<0.000000e+00> : vector<1xf32>
    %7 = vector.multi_reduction <add>, %6, %cst [1, 2] : vector<1x8x6000xf32> to vector<1xf32>
    %8 = vector.shape_cast %7 : vector<1xf32> to vector<1x1x1xf32>
    %9 = vector.extract %8[0, 0, 0] : f32 from vector<1x1x1xf32>
    %10 = vector.broadcast %9 : f32 to vector<1x1xf32>
    %11 = arith.addf %4, %10 : vector<1x1xf32>
    %c0_4 = arith.constant 0 : index
    %c0_5 = arith.constant 0 : index
    %12 = vector.load %arg3[%c0_4, %c0_5] : memref<1x1xf32, #tpu.memory_space<vmem>>, vector<1x1xf32>
    tpu.vector_store %arg3[%c0_4, %c0_5], %11 {strides = array<i32>} : memref<1x1xf32, #tpu.memory_space<vmem>>, vector<1x1xf32>,
    %c0_i32_6 = arith.constant 0 : i32
    %13 = arith.cmpi eq, %arg0, %c0_i32_6 : i32
    %14 = arith.extui %13 : i1 to i32
    %c0_i32_7 = arith.constant 0 : i32
    %15 = arith.cmpi ne, %14, %c0_i32_7 : i32
    scf.if %15 {
      %c0_8 = arith.constant 0 : index
      %c0_9 = arith.constant 0 : index
      %16 = vector.load %arg3[%c0_8, %c0_9] : memref<1x1xf32, #tpu.memory_space<vmem>>, vector<1x1xf32>
      %cst_10 = arith.constant 2.08333331E-5 : f32
      %17 = vector.broadcast %cst_10 : f32 to vector<1x1xf32>
      %18 = arith.mulf %16, %17 : vector<1x1xf32>
      %19 = math.sqrt %18 : vector<1x1xf32>
      %c0_11 = arith.constant 0 : index
      %20 = memref.load %arg1[%c0_11] : memref<1xf32, #tpu.memory_space<smem>>
      %21 = vector.broadcast %20 : f32 to vector<1x1xf32>
      %22 = arith.mulf %19, %21 : vector<1x1xf32>
      %c0_12 = arith.constant 0 : index
      %c0_13 = arith.constant 0 : index
      %23 = vector.load %arg3[%c0_12, %c0_13] : memref<1x1xf32, #tpu.memory_space<vmem>>, vector<1x1xf32>
      tpu.vector_store %arg3[%c0_12, %c0_13], %22 {strides = array<i32>} : memref<1x1xf32, #tpu.memory_space<vmem>>, vector<1x1xf32>,
    } else {
    }
    return
  }
  func.func @transform_0(%arg0: i32) -> i32 {
    %c0_i32 = arith.constant 0 : i32
    %c0_i32_0 = arith.constant 0 : i32
    return %c0_i32 : i32
  }
  func.func @transform_1(%arg0: i32) -> (i32, i32) {
    %c0_i32 = arith.constant 0 : i32
    %c0_i32_0 = arith.constant 0 : i32
    return %c0_i32, %arg0 : i32, i32
  }
  func.func @transform_2(%arg0: i32) -> (i32, i32) {
    %c0_i32 = arith.constant 0 : i32
    %c0_i32_0 = arith.constant 0 : i32
    %c0_i32_1 = arith.constant 0 : i32
    return %c0_i32, %c0_i32_0 : i32, i32
  }
}

</mosaic_0001>

<llo_original>
// kernel: tpu_custom_call.1
$region0: #{tpu_custom_call.1}
  #allocation0 [shape = 'u32[]', space=smem, size = 0x4, offset = 0x4, fixed_abs, tag = 'smem constant byte address 0x4 - core index']
  #allocation1 [shape = 'u32[72,128]{1,0:T(1,128)}', space=vmem, size = 0x9000, scoped, tag = 'internal scratch']
  #allocation2 [shape = 'f32[1]{0:T(128)S(6)}', space=smem, size = 0x200, scoped, tag = 'scoped memory for tpu_custom_call.1']
  %s0 = inlined_call_operand.<no memory space> [shape: f32[1], index: 0, kind: input, shape index: {}]
  %s1 = inlined_call_operand.hbm [shape: f32[8,6000], index: 1, kind: input, shape index: {}]
  %s2 = inlined_call_operand.hbm [shape: f32[1,1], index: 2, kind: output, shape index: {}]
  %s3 = sld [smem:[#allocation0]]
  $region30: #{tpu_custom_call.1} parent=0
    _
  %s5 = ssub.s32 1, %s3
  %s6 = scalar_select 0, %s5, %s3
  %7 = sst [smem:[#allocation2]] %s0
  $region1: #{tpu_custom_call.1} parent=0
    #allocation3 [shape = 'u8[192512]{0}', space=vmem, size = 0x2f000, scoped, tag = 'input window, operand 1, single buffered']
    #allocation4 [shape = 's32[1]{0}', space=sflag, size = 0x4, scoped, tag = 'scoped memory for tpu_custom_call.1']
    #allocation5 [shape = 's32[1]{0}', space=sflag, size = 0x4, scoped, tag = 'scoped memory for tpu_custom_call.1']
    #allocation6 [shape = 'u8[512]{0}', space=vmem, size = 0x400, scoped, tag = 'output window, operand 0, single buffered']
    %8 = vsyncpa [#allocation4], 0
    %9 = vsyncpa [#allocation5], 0
    // Predicated region
    $region2: #{tpu_custom_call.1} parent=1 // pred_check
      _
    $region3: #{tpu_custom_call.1} parent=1 // pred_check_branch
      %11 = sbr.rel (0) target = $region5
    $region4: #{tpu_custom_call.1} parent=1 // pred_region
      _
    $region5: #{tpu_custom_call.1} parent=1 // pred_fallthru
      _
    // Predicated region
    $region6: #{tpu_custom_call.1} parent=1 // pred_check
      _
    $region7: #{tpu_custom_call.1} parent=1 // pred_check_branch
      %13 = sbr.rel (0) target = $region9
    $region8: #{tpu_custom_call.1} parent=1 // pred_region
      %15 = vsyncadd [#allocation4], 0
      %s17 = sshll.u32 %s1, 4
      %s18 = int_to_ptr.hbm [resolvable:$true] %s17
      %s19 = sshll.u32 [#allocation3], 4
      %s20 = int_to_ptr.vmem [resolvable:$true] %s19
      %22 = dma.hbm_to_vmem [thread:$0]  %s18, 6016, %s20, [#allocation4]
    $region9: #{tpu_custom_call.1} parent=1 // pred_fallthru
      _
    // Predicated region
    $region10: #{tpu_custom_call.1} parent=1 // pred_check
      _
    $region11: #{tpu_custom_call.1} parent=1 // pred_check_branch
      %24 = sbr.rel (0) target = $region13
    $region12: #{tpu_custom_call.1} parent=1 // pred_region
      %26 = dma.done [#allocation4], 6016
    $region13: #{tpu_custom_call.1} parent=1 // pred_fallthru
      _
    %p27 = scmp.eq.s32.totalorder 0, 0
    // Predicated region
    $region14: #{tpu_custom_call.1} parent=1 // pred_check
      %p28 = pneg %p27
    $region15: #{tpu_custom_call.1} parent=1 // pred_check_branch
      %30 = sbr.rel (%p28) target = $region17
    $region16: #{tpu_custom_call.1} parent=1 // pred_region
      %vm31 = vcmask 0
      %32 = vst.msk [vmem:[#allocation6] sm:$0x1] %vm31, 0.0
    $region17: #{tpu_custom_call.1} parent=1 // pred_fallthru
      _
    %v33 = vld [vmem:[#allocation3] sm:$0xff]
    %v34 = vld [vmem:[#allocation3 + $0x8] sm:$0xff]
    %v35 = vld [vmem:[#allocation3 + $0x10] sm:$0xff]
    %v36 = vld [vmem:[#allocation3 + $0x18] sm:$0xff]
    %v37 = vld [vmem:[#allocation3 + $0x20] sm:$0xff]
    %v38 = vld [vmem:[#allocation3 + $0x28] sm:$0xff]
    %v39 = vld [vmem:[#allocation3 + $0x30] sm:$0xff]
    %v40 = vld [vmem:[#allocation3 + $0x38] sm:$0xff]
    %v41 = vld [vmem:[#allocation3 + $0x40] sm:$0xff]
    %v42 = vld [vmem:[#allocation3 + $0x48] sm:$0xff]
    %v43 = vld [vmem:[#allocation3 + $0x50] sm:$0xff]
    %v44 = vld [vmem:[#allocation3 + $0x58] sm:$0xff]
    %v45 = vld [vmem:[#allocation3 + $0x60] sm:$0xff]
    %v46 = vld [vmem:[#allocation3 + $0x68] sm:$0xff]
    %v47 = vld [vmem:[#allocation3 + $0x70] sm:$0xff]
    %v48 = vld [vmem:[#allocation3 + $0x78] sm:$0xff]
    %v49 = vld [vmem:[#allocation3 + $0x80] sm:$0xff]
    %v50 = vld [vmem:[#allocation3 + $0x88] sm:$0xff]
    %v51 = vld [vmem:[#allocation3 + $0x90] sm:$0xff]
    %v52 = vld [vmem:[#allocation3 + $0x98] sm:$0xff]
    %v53 = vld [vmem:[#allocation3 + $0xa0] sm:$0xff]
    %v54 = vld [vmem:[#allocation3 + $0xa8] sm:$0xff]
    %v55 = vld [vmem:[#allocation3 + $0xb0] sm:$0xff]
    %v56 = vld [vmem:[#allocation3 + $0xb8] sm:$0xff]
    %v57 = vld [vmem:[#allocation3 + $0xc0] sm:$0xff]
    %v58 = vld [vmem:[#allocation3 + $0xc8] sm:$0xff]
    %v59 = vld [vmem:[#allocation3 + $0xd0] sm:$0xff]
    %v60 = vld [vmem:[#allocation3 + $0xd8] sm:$0xff]
    %v61 = vld [vmem:[#allocation3 + $0xe0] sm:$0xff]
    %v62 = vld [vmem:[#allocation3 + $0xe8] sm:$0xff]
    %v63 = vld [vmem:[#allocation3 + $0xf0] sm:$0xff]
    %v64 = vld [vmem:[#allocation3 + $0xf8] sm:$0xff]
    %v65 = vld [vmem:[#allocation3 + $0x100] sm:$0xff]
    %v66 = vld [vmem:[#allocation3 + $0x108] sm:$0xff]
    %v67 = vld [vmem:[#allocation3 + $0x110] sm:$0xff]
    %v68 = vld [vmem:[#allocation3 + $0x118] sm:$0xff]
    %v69 = vld [vmem:[#allocation3 + $0x120] sm:$0xff]
    %v70 = vld [vmem:[#allocation3 + $0x128] sm:$0xff]
    %v71 = vld [vmem:[#allocation3 + $0x130] sm:$0xff]
    %v72 = vld [vmem:[#allocation3 + $0x138] sm:$0xff]
    %v73 = vld [vmem:[#allocation3 + $0x140] sm:$0xff]
    %v74 = vld [vmem:[#allocation3 + $0x148] sm:$0xff]
    %v75 = vld [vmem:[#allocation3 + $0x150] sm:$0xff]
    %v76 = vld [vmem:[#allocation3 + $0x158] sm:$0xff]
    %v77 = vld [vmem:[#allocation3 + $0x160] sm:$0xff]
    %v78 = vld [vmem:[#allocation3 + $0x168] sm:$0xff]
    %v79 = vld [vmem:[#allocation3 + $0x170] sm:$0xff]
    %v80 = vld [vmem:[#allocation6] sm:$0x1]
    %v81 = vmul.f32 %v33, %v33
    %v82 = vmul.f32 %v34, %v34
    %v83 = vmul.f32 %v35, %v35
    %v84 = vmul.f32 %v36, %v36
    %v85 = vmul.f32 %v37, %v37
    %v86 = vmul.f32 %v38, %v38
    %v87 = vmul.f32 %v39, %v39
    %v88 = vmul.f32 %v40, %v40
    %v89 = vmul.f32 %v41, %v41
    %v90 = vmul.f32 %v42, %v42
    %v91 = vmul.f32 %v43, %v43
    %v92 = vmul.f32 %v44, %v44
    %v93 = vmul.f32 %v45, %v45
    %v94 = vmul.f32 %v46, %v46
    %v95 = vmul.f32 %v47, %v47
    %v96 = vmul.f32 %v48, %v48
    %v97 = vmul.f32 %v49, %v49
    %v98 = vmul.f32 %v50, %v50
    %v99 = vmul.f32 %v51, %v51
    %v100 = vmul.f32 %v52, %v52
    %v101 = vmul.f32 %v53, %v53
    %v102 = vmul.f32 %v54, %v54
    %v103 = vmul.f32 %v55, %v55
    %v104 = vmul.f32 %v56, %v56
    %v105 = vmul.f32 %v57, %v57
    %v106 = vmul.f32 %v58, %v58
    %v107 = vmul.f32 %v59, %v59
    %v108 = vmul.f32 %v60, %v60
    %v109 = vmul.f32 %v61, %v61
    %v110 = vmul.f32 %v62, %v62
    %v111 = vmul.f32 %v63, %v63
    %v112 = vmul.f32 %v64, %v64
    %v113 = vmul.f32 %v65, %v65
    %v114 = vmul.f32 %v66, %v66
    %v115 = vmul.f32 %v67, %v67
    %v116 = vmul.f32 %v68, %v68
    %v117 = vmul.f32 %v69, %v69
    %v118 = vmul.f32 %v70, %v70
    %v119 = vmul.f32 %v71, %v71
    %v120 = vmul.f32 %v72, %v72
    %v121 = vmul.f32 %v73, %v73
    %v122 = vmul.f32 %v74, %v74
    %v123 = vmul.f32 %v75, %v75
    %v124 = vmul.f32 %v76, %v76
    %v125 = vmul.f32 %v77, %v77
    %v126 = vmul.f32 %v78, %v78
    %v127 = vmul.f32 %v79, %v79
    %v128 = vadd.f32 %v81, %v82
    %v129 = vadd.f32 %v128, %v83
    %v130 = vadd.f32 %v129, %v84
    %v131 = vadd.f32 %v130, %v85
    %v132 = vadd.f32 %v131, %v86
    %v133 = vadd.f32 %v132, %v87
    %v134 = vadd.f32 %v133, %v88
    %v135 = vadd.f32 %v134, %v89
    %v136 = vadd.f32 %v135, %v90
    %v137 = vadd.f32 %v136, %v91
    %v138 = vadd.f32 %v137, %v92
    %v139 = vadd.f32 %v138, %v93
    %v140 = vadd.f32 %v139, %v94
    %v141 = vadd.f32 %v140, %v95
    %v142 = vadd.f32 %v141, %v96
    %v143 = vadd.f32 %v142, %v97
    %v144 = vadd.f32 %v143, %v98
    %v145 = vadd.f32 %v144, %v99
    %v146 = vadd.f32 %v145, %v100
    %v147 = vadd.f32 %v146, %v101
    %v148 = vadd.f32 %v147, %v102
    %v149 = vadd.f32 %v148, %v103
    %v150 = vadd.f32 %v149, %v104
    %v151 = vadd.f32 %v150, %v105
    %v152 = vadd.f32 %v151, %v106
    %v153 = vadd.f32 %v152, %v107
    %v154 = vadd.f32 %v153, %v108
    %v155 = vadd.f32 %v154, %v109
    %v156 = vadd.f32 %v155, %v110
    %v157 = vadd.f32 %v156, %v111
    %v158 = vadd.f32 %v157, %v112
    %v159 = vadd.f32 %v158, %v113
    %v160 = vadd.f32 %v159, %v114
    %v161 = vadd.f32 %v160, %v115
    %v162 = vadd.f32 %v161, %v116
    %v163 = vadd.f32 %v162, %v117
    %v164 = vadd.f32 %v163, %v118
    %v165 = vadd.f32 %v164, %v119
    %v166 = vadd.f32 %v165, %v120
    %v167 = vadd.f32 %v166, %v121
    %v168 = vadd.f32 %v167, %v122
    %v169 = vadd.f32 %v168, %v123
    %v170 = vadd.f32 %v169, %v124
    %v171 = vadd.f32 %v170, %v125
    %v172 = vadd.f32 %v171, %v126
    %vm173 = vcmask 916480
    %v174 = vsel %vm173, %v127, 0.0
    %v175 = vadd.f32 %v172, %v174
    %176 = vadd.xlane.f32.xlu0 %v175
    %v177 = vpop.xlane.xlu0 %176
    %v178 = vrot.slane %v177, 4
    %v179 = vadd.f32 %v177, %v178
    %v180 = vrot.slane %v179, 2
    %v181 = vadd.f32 %v179, %v180
    %v182 = vrot.slane %v181, 1
    %v183 = vadd.f32 %v181, %v182
    %s184 = vtos %v183
    %v185 = vstv %s184
    %v186 = vadd.f32 %v80, %v185
    %vm187 = vcmask 0
    %188 = vst.msk [vmem:[#allocation6] sm:$0x1] %vm187, %v186
    // Predicated region
    $region18: #{tpu_custom_call.1} parent=1 // pred_check
      %p189 = pneg %p27
    $region19: #{tpu_custom_call.1} parent=1 // pred_check_branch
      %191 = sbr.rel (%p189) target = $region21
    $region20: #{tpu_custom_call.1} parent=1 // pred_region
      %v192 = vld [vmem:[#allocation6] sm:$0x1]
      %v193 = vmul.f32 %v192, 2.0833333e-05
      %v194 = vrsqrt.pop %v193
      %v195 = vmul.f32 %v194, %v193
      %v196 = vmul.f32 %v195, %v194
      %v197 = vmul.f32 0.5, %v196
      %v198 = vsub.f32 1.5, %v197
      %v199 = vmul.f32 %v194, %v198
      %v200 = vmul.f32 %v193, %v199
      %vm201 = vcmp.eq.f32.partialorder %v193, inf
      %v202 = vsel %vm201, %v193, %v200
      %vm203 = vcmp.eq.f32.partialorder %v193, 0.0
      %v204 = vand.u32 %v193, 2147483648
      %v205 = vsel %vm203, %v204, %v202
      %s206 = sld [smem:[#allocation2]]
      %v207 = vstv %s206
      %v208 = vmul.f32 %v205, %v207
      %209 = vst.msk [vmem:[#allocation6] sm:$0x1] %vm187, %v208
    $region21: #{tpu_custom_call.1} parent=1 // pred_fallthru
      _
    // Predicated region
    $region22: #{tpu_custom_call.1} parent=1 // pred_check
      _
    $region23: #{tpu_custom_call.1} parent=1 // pred_check_branch
      %211 = sbr.rel (0) target = $region25
    $region24: #{tpu_custom_call.1} parent=1 // pred_region
      %213 = vsyncadd [#allocation5], 0
      %s215 = sshll.u32 [#allocation6], 4
      %s216 = int_to_ptr.vmem [resolvable:$true] %s215
      %s217 = sshll.u32 %s2, 4
      %s218 = int_to_ptr.hbm [resolvable:$true] %s217
      %220 = dma.vmem_to_hbm [thread:$0]  %s216, 16, %s218, [#allocation5]
    $region25: #{tpu_custom_call.1} parent=1 // pred_fallthru
      _
    // Predicated region
    $region26: #{tpu_custom_call.1} parent=1 // pred_check
      _
    $region27: #{tpu_custom_call.1} parent=1 // pred_check_branch
      %222 = sbr.rel (0) target = $region29
    $region28: #{tpu_custom_call.1} parent=1 // pred_region
      %224 = dma.done [#allocation5], 16
    $region29: #{tpu_custom_call.1} parent=1 // pred_fallthru
      _
    %225 = vsyncpa [#allocation4], 1
    %226 = vsyncpa [#allocation5], 1

</llo_original>
